<compile_context>
chip_gen: v6e
topology: v6e:2x2x1
jax: 0.10.0
libtpu: 0.0.40
codegen_flags: <defaults>
</compile_context>

<pallas_src>
import math

import jax
import jax.numpy as jnp
from jax import lax
from jax.experimental import pallas as pl
from jax.experimental.pallas import tpu as pltpu

F_C = [64, 128, 320, 512]
NUM_CLASSES = 41
BN_EPS = 1e-5


# ----------------------------------------------------------------------------
# VMEM budget (per-generation; v7x only has 64 MiB physical VMEM per TC)
# ----------------------------------------------------------------------------
def _default_vmem_limit():
    try:
        info = pltpu.get_tpu_info()
        cap = getattr(info, "vmem_capacity_bytes", None)
        if cap:
            return min(int(cap) * 3 // 4, 96 * 1024 * 1024)
    except Exception:
        pass
    return 48 * 1024 * 1024


_VMEM_LIMIT = _default_vmem_limit()


def _round_up(x, m):
    return ((x + m - 1) // m) * m


def _tile(dim, small_mult, big_tile, single_limit):
    """Pick (tile, padded_dim): one full tile for small dims, else big_tile."""
    if dim <= single_limit:
        t = _round_up(dim, small_mult)
        return t, t
    return big_tile, _round_up(dim, big_tile)


# ----------------------------------------------------------------------------
# Pallas kernels
# ----------------------------------------------------------------------------
def _mm_kernel_plain(p_ref, w_ref, shift_ref, o_ref, acc_ref):
    @pl.when(pl.program_id(2) == 0)
    def _init():
        acc_ref[...] = jnp.zeros_like(acc_ref)

    acc_ref[...] += jnp.dot(p_ref[...], w_ref[...],
                            preferred_element_type=jnp.float32)

    @pl.when(pl.program_id(2) == pl.num_programs(2) - 1)
    def _fin():
        o_ref[...] = (acc_ref[...] + shift_ref[...]).astype(o_ref.dtype)


def _mm_kernel_relu(p_ref, w_ref, shift_ref, o_ref, acc_ref):
    @pl.when(pl.program_id(2) == 0)
    def _init():
        acc_ref[...] = jnp.zeros_like(acc_ref)

    acc_ref[...] += jnp.dot(p_ref[...], w_ref[...],
                            preferred_element_type=jnp.float32)

    @pl.when(pl.program_id(2) == pl.num_programs(2) - 1)
    def _fin():
        o_ref[...] = jnp.maximum(acc_ref[...] + shift_ref[...],
                                 0.0).astype(o_ref.dtype)


def _mm_kernel_masked(p_ref, w_ref, shift_ref, mask_ref, o_ref, acc_ref):
    """Per-column ReLU mask (exact for mask in {0,1}); used by the fused skv conv."""
    @pl.when(pl.program_id(2) == 0)
    def _init():
        acc_ref[...] = jnp.zeros_like(acc_ref)

    acc_ref[...] += jnp.dot(p_ref[...], w_ref[...],
                            preferred_element_type=jnp.float32)

    @pl.when(pl.program_id(2) == pl.num_programs(2) - 1)
    def _fin():
        y = acc_ref[...] + shift_ref[...]
        y = y + mask_ref[...] * (jnp.maximum(y, 0.0) - y)
        o_ref[...] = y.astype(o_ref.dtype)


def _dee_gate_kernel(qke_ref, v_ref, r_ref, o_ref):
    # a = q*k ; att = sigmoid(a + sigmoid(edge)*a) ; out = att*v + r
    # q/k/e live in lanes 0/1/2 of one block; channel broadcast stays in-kernel.
    qke = qke_ref[...].astype(jnp.float32)
    a = qke[:, 0:1] * qke[:, 1:2]
    att = jax.nn.sigmoid(a + jax.nn.sigmoid(qke[:, 2:3]) * a)
    o_ref[...] = (att * v_ref[...].astype(jnp.float32)
                  + r_ref[...].astype(jnp.float32)).astype(o_ref.dtype)


def _seg_gate_kernel(e_ref, x_ref, o_ref):
    # seg = sigmoid(edge) * seg + seg   (edge is [tm,1], seg is [tm,C])
    x = x_ref[...].astype(jnp.float32)
    e = e_ref[...].astype(jnp.float32)
    o_ref[...] = (jax.nn.sigmoid(e) * x + x).astype(o_ref.dtype)


# ----------------------------------------------------------------------------
# Pallas wrappers
# ----------------------------------------------------------------------------
def _pallas_matmul(patches, wmat, shift, relu=False, relu_mask=None):
    """(M,K)@(K,N) + shift (+ ReLU / per-col mask). bf16 in/out, f32 accumulate."""
    M, K = patches.shape
    _, N = wmat.shape
    tm, Mp = _tile(M, 16, 256, 256)       # 16-sublane bf16 LHS tiles
    tn, Np = _tile(N, 128, 256, 256)      # split N>=320 -> >=2 parallel blocks
    tk, Kp = _tile(K, 128, 1024, 2048)    # big K steps: fewer grid revisits

    p = patches
    if Mp != M or Kp != K:
        p = jnp.pad(p, ((0, Mp - M), (0, Kp - K)))
    p = p.astype(jnp.bfloat16)

    w = wmat
    if Kp != K or Np != N:
        w = jnp.pad(w, ((0, Kp - K), (0, Np - N)))
    w = w.astype(jnp.bfloat16)

    s = shift
    if Np != N:
        s = jnp.pad(s, ((0, 0), (0, Np - N)))
    s = s.astype(jnp.float32)

    in_specs = [
        pl.BlockSpec((tm, tk), lambda i, j, k: (i, k)),
        pl.BlockSpec((tk, tn), lambda i, j, k: (k, j)),
        pl.BlockSpec((1, tn), lambda i, j, k: (0, j)),
    ]
    args = [p, w, s]
    if relu_mask is not None:
        m = relu_mask
        if Np != N:
            m = jnp.pad(m, ((0, 0), (0, Np - N)))
        args.append(m.astype(jnp.float32))
        in_specs.append(pl.BlockSpec((1, tn), lambda i, j, k: (0, j)))
        kernel = _mm_kernel_masked
    else:
        kernel = _mm_kernel_relu if relu else _mm_kernel_plain

    out = pl.pallas_call(
        kernel,
        out_shape=jax.ShapeDtypeStruct((Mp, Np), jnp.bfloat16),
        grid=(Mp // tm, Np // tn, Kp // tk),
        in_specs=in_specs,
        out_specs=pl.BlockSpec((tm, tn), lambda i, j, k: (i, j)),
        scratch_shapes=[pltpu.VMEM((tm, tn), jnp.float32)],
        compiler_params=pltpu.CompilerParams(
            dimension_semantics=("parallel", "parallel", "arbitrary"),
            vmem_limit_bytes=_VMEM_LIMIT),
    )(*args)
    if Mp != M or Np != N:
        out = out[:M, :N]
    return out


def _pallas_rows(kernel, flats, out_cols):
    """Row-tiled elementwise kernel: rows on sublanes, channels on lanes."""
    M = flats[0].shape[0]
    tm = min(512, _round_up(M, 16))
    Mp = _round_up(M, tm)
    padded = [f if Mp == M else jnp.pad(f, ((0, Mp - M), (0, 0))) for f in flats]
    out = pl.pallas_call(
        kernel,
        out_shape=jax.ShapeDtypeStruct((Mp, out_cols), jnp.bfloat16),
        grid=(Mp // tm,),
        in_specs=[pl.BlockSpec((tm, f.shape[1]), lambda i: (i, 0))
                  for f in padded],
        out_specs=pl.BlockSpec((tm, out_cols), lambda i: (i, 0)),
        compiler_params=pltpu.CompilerParams(
            dimension_semantics=("parallel",),
            vmem_limit_bytes=_VMEM_LIMIT),
    )(*padded)
    return out if Mp == M else out[:M]


# ----------------------------------------------------------------------------
# Conv layers
# ----------------------------------------------------------------------------
def _conv_small(p, x, stride, pad, bn, relu):
    """Skinny convs (Cout<=8): plain XLA conv; padding them onto the MXU wastes
    >90% of the work."""
    w, b = p["w"], p["b"]
    w_hwio = jnp.transpose(w, (2, 3, 1, 0)).astype(jnp.bfloat16)
    y = lax.conv_general_dilated(
        x.astype(jnp.bfloat16), w_hwio, (stride, stride),
        ((pad, pad), (pad, pad)),
        dimension_numbers=("NHWC", "HWIO", "NHWC"),
        preferred_element_type=jnp.float32)
    if bn:
        # eval-mode BN (gamma=1, beta=0, mean=0, var=1)
        scale = 1.0 / math.sqrt(1.0 + BN_EPS)
        y = y * scale + b.astype(jnp.float32) * scale
    else:
        y = y + b.astype(jnp.float32)
    if relu:
        y = jnp.maximum(y, 0.0)
    return y.astype(jnp.bfloat16)


def conv2d(p, x, stride=1, pad=0, bn=False, relu=False):
    """x: [N, H, W, Cin] (NHWC, bf16/f32) -> [N, Ho, Wo, Cout] bf16."""
    w, b = p["w"], p["b"]                       # w: [Cout, Cin, kh, kw]
    cout, cin, kh, kw = w.shape
    if cout <= 8:
        return _conv_small(p, x, stride, pad, bn, relu)

    n = x.shape[0]
    x = x.astype(jnp.bfloat16)
    if kh == 1 and kw == 1 and stride == 1 and pad == 0:
        ho, wo = x.shape[1], x.shape[2]
        patches = x.reshape(n * ho * wo, cin)
    else:
        # im2col in bf16; feature order is channel-major (Cin, kh, kw), which
        # matches w.reshape(cout, cin*kh*kw) below (verified in __main__).
        patches = lax.conv_general_dilated_patches(
            x, (kh, kw), (stride, stride), ((pad, pad), (pad, pad)),
            dimension_numbers=("NHWC", "HWIO", "NHWC"))
        ho, wo = patches.shape[1], patches.shape[2]
        patches = patches.reshape(n * ho * wo, cin * kh * kw)

    wmat = w.reshape(cout, cin * kh * kw).T.astype(jnp.float32)
    if bn:
        scale = 1.0 / math.sqrt(1.0 + BN_EPS)   # BN scale folded into weights
        wmat = wmat * scale
        shift = (b.astype(jnp.float32) * scale).reshape(1, cout)
    else:
        shift = b.astype(jnp.float32).reshape(1, cout)

    out = _pallas_matmul(patches, wmat, shift, relu=relu)
    return out.reshape(n, ho, wo, cout)


def conv2d_fused_skv(p_sa, p_k, p_v, r):
    """dee's sa / k / v convs (same input r, all 3x3 pad1 s1) in ONE matmul.

    Column layout: [v(C) | sa(1) | k(1)] so the wide v slice is lane-aligned.
    BN(scale folded) + ReLU on k & v only.
    """
    c = p_v["w"].shape[0]
    cin = p_v["w"].shape[1]
    n, h, w_, _ = r.shape
    r = r.astype(jnp.bfloat16)
    patches = lax.conv_general_dilated_patches(
        r, (3, 3), (1, 1), ((1, 1), (1, 1)),
        dimension_numbers=("NHWC", "HWIO", "NHWC"))
    patches = patches.reshape(n * h * w_, cin * 9)

    scale = 1.0 / math.sqrt(1.0 + BN_EPS)
    w_v = p_v["w"].reshape(c, cin * 9).astype(jnp.float32) * scale
    w_sa = p_sa["w"].reshape(1, cin * 9).astype(jnp.float32)
    w_k = p_k["w"].reshape(1, cin * 9).astype(jnp.float32) * scale
    wmat = jnp.concatenate([w_v, w_sa, w_k], axis=0).T        # [K, C+2]
    shift = jnp.concatenate(
        [p_v["b"] * scale, p_sa["b"], p_k["b"] * scale]
    ).reshape(1, c + 2).astype(jnp.float32)
    mask = jnp.concatenate(
        [jnp.ones((c,), jnp.float32), jnp.zeros((1,), jnp.float32),
         jnp.ones((1,), jnp.float32)]
    ).reshape(1, c + 2)

    out = _pallas_matmul(patches, wmat, shift, relu_mask=mask)
    out = out.reshape(n, h, w_, c + 2)
    # r1 (sa), k(r), v(r)
    return out[..., c:c + 1], out[..., c + 1:c + 2], out[..., :c]


def up_bilinear(x, s):
    # matches nn.Upsample(scale_factor=s, mode='bilinear') (glue, plain JAX)
    n, h, w, c = x.shape
    return jax.image.resize(x, (n, h * s, w * s, c), method="bilinear")


# ----------------------------------------------------------------------------
# Parameters (deterministic, built in-script; PyTorch OIHW weight layout)
# ----------------------------------------------------------------------------
def build_params(key):
    keys = list(jax.random.split(key, 64))
    k_iter = iter(keys)

    def conv_p(cin, cout, k):
        kk1, kk2 = jax.random.split(next(k_iter))
        fan_in = cin * k * k
        w = jax.random.normal(kk1, (cout, cin, k, k), jnp.float32) / math.sqrt(fan_in)
        b = 0.01 * jax.random.normal(kk2, (cout,), jnp.float32)
        return {"w": w, "b": b}

    params = {}
    # TODO(synk): mit_b2 (SegFormer-B2 transformer backbone) source not provided;
    # replaced by 4 strided conv stages producing the same pyramid shapes.
    params["enc"] = [
        conv_p(3, F_C[0], 7),
        conv_p(F_C[0], F_C[1], 3),
        conv_p(F_C[1], F_C[2], 3),
        conv_p(F_C[2], F_C[3], 3),
    ]
    # TODO(synk): early_edge('std') source not provided; stand-in 3x3 conv 3->1 + ReLU.
    params["early"] = conv_p(3, 1, 3)
    params["embed"] = conv_p(1, 1, 7)  # edge_fea.embeding (Conv 7x7 s2 + BN + ReLU)

    params["dee"] = []
    for c in F_C:
        params["dee"].append(
            {
                # TODO(synk): m.SA_conv(r_c) source not provided; stand-in 3x3 conv r_c->1.
                "sa": conv_p(c, 1, 3),
                "d_down": conv_p(1, 1, 3),
                "edge": conv_p(2, 1, 3),
                "q": conv_p(1, 1, 3),
                "k": conv_p(c, 1, 3),
                "v": conv_p(c, c, 3),
            }
        )

    params["edge_dw1"] = conv_p(4, 4, 3)   # edge.dw[0..2]
    params["edge_dw2"] = conv_p(4, 1, 3)   # edge.dw[3]

    params["head"] = {
        "c0": conv_p(F_C[0], F_C[0], 1),
        "c1": conv_p(F_C[1], F_C[0], 1),
        "c2": conv_p(F_C[2], F_C[0], 1),
        "c3": conv_p(F_C[3], F_C[0], 1),
        "fin": conv_p(F_C[0], F_C[0], 3),
    }
    params["fin"] = conv_p(F_C[0], NUM_CLASSES, 3)
    return params


# ----------------------------------------------------------------------------
# Sub-module forwards (NHWC, bf16 internally)
# ----------------------------------------------------------------------------
def encoder_forward(p, rgb):
    f0 = conv2d(p[0], rgb, stride=4, pad=3, relu=True)
    f1 = conv2d(p[1], f0, stride=2, pad=1, relu=True)
    f2 = conv2d(p[2], f1, stride=2, pad=1, relu=True)
    f3 = conv2d(p[3], f2, stride=2, pad=1, relu=True)
    return [f0, f1, f2, f3]


def dee_forward(p, d, r):
    # one fused matmul for sa/k/v (shared im2col of r, v lane-aligned)
    r1, k_, v = conv2d_fused_skv(p["sa"], p["k"], p["v"], r)
    d = conv2d(p["d_down"], d, stride=2, pad=1)                    # skinny -> XLA
    e = conv2d(p["edge"], jnp.concatenate([d, r1], axis=-1), stride=1, pad=1)
    q = conv2d(p["q"], d, stride=1, pad=1, bn=True, relu=True)
    # fused attention gate: att = sigmoid(q*k + sigmoid(e)*q*k); r_out = att*v + r
    n, h, w_, c = r.shape
    m_rows = n * h * w_
    qke = jnp.concatenate([q.reshape(m_rows, 1), k_.reshape(m_rows, 1),
                           e.reshape(m_rows, 1)], axis=-1)         # one (M,3) stream
    flats = [qke, v.reshape(m_rows, c), r.astype(jnp.bfloat16).reshape(m_rows, c)]
    r_out = _pallas_rows(_dee_gate_kernel, flats, c).reshape(r.shape)
    return e, r_out


def edge_fea_forward(params, d, fea_list):
    d = conv2d(params["embed"], d, stride=2, pad=3, bn=True, relu=True)
    e_l, fea_r = [], []
    for i in range(4):
        d, f = dee_forward(params["dee"][i], d, fea_list[i])
        e_l.append(d)
        fea_r.append(f)
    return e_l, fea_r


def edge_forward(params, e_l):
    e_l = list(e_l)
    if e_l[0].shape[1:3] != e_l[1].shape[1:3]:
        e_l[1] = up_bilinear(e_l[1], 2)
        e_l[2] = up_bilinear(e_l[2], 4)
        e_l[3] = up_bilinear(e_l[3], 8)
    x = jnp.concatenate(e_l, axis=-1)
    x = conv2d(params["edge_dw1"], x, stride=1, pad=1, bn=True, relu=True)
    x = conv2d(params["edge_dw2"], x, stride=1, pad=1)
    e_l.append(x)
    return e_l


def head_forward(p, fea_list):
    f0, f1, f2, f3 = fea_list
    # 1x1 projections BEFORE upsampling (1x1 conv and bilinear resize commute):
    # nothing wider than 64 channels is upsampled, summed, or re-read.
    s0 = conv2d(p["c0"], f0)
    s1 = conv2d(p["c1"], f1)
    s2 = conv2d(p["c2"], f2)
    s3 = conv2d(p["c3"], f3)
    if f0.shape[1:3] != f1.shape[1:3]:
        s1 = up_bilinear(s1, 2)
        s2 = up_bilinear(s2, 4)
        s3 = up_bilinear(s3, 8)
    s = s0 + s1 + s2 + s3
    fin = conv2d(p["fin"], s, stride=1, pad=1)
    return fin


def seg_seg_forward(params, rgb_nchw):
    rgb = jnp.transpose(rgb_nchw, (0, 2, 3, 1)).astype(jnp.bfloat16)  # NCHW -> NHWC
    fea_list = encoder_forward(params["enc"], rgb)
    d = conv2d(params["early"], rgb, stride=1, pad=1, relu=True)   # early_edge stand-in
    e_l, fea_r = edge_fea_forward(params, d, fea_list)
    edge_list = edge_forward(params, e_l)
    seg = head_forward(params["head"], fea_r)
    # seg = sigmoid(edge)*seg + seg  (edge row broadcast over C inside kernel)
    n, h, w_, c = seg.shape
    m_rows = n * h * w_
    seg = _pallas_rows(_seg_gate_kernel,
                       [edge_list[-1].reshape(m_rows, 1), seg.reshape(m_rows, c)],
                       c).reshape(seg.shape)
    pred = up_bilinear(conv2d(params["fin"], seg, stride=1, pad=1), 4)
    # back to NCHW / f32 at the module boundary
    pred = jnp.transpose(pred, (0, 3, 1, 2)).astype(jnp.float32)
    edge_list = [jnp.transpose(e, (0, 3, 1, 2)).astype(jnp.float32)
                 for e in edge_list]
    return pred, edge_list


# ----------------------------------------------------------------------------
if __name__ == "__main__":
    key = jax.random.PRNGKey(0)
    pkey, xkey = jax.random.split(key)
    params = build_params(pkey)

    # Correctness probe: conv-as-matmul (Pallas) vs XLA conv, bf16 tolerance.
    xt = jax.random.normal(jax.random.PRNGKey(1), (1, 8, 8, 16), jnp.float32)
    wt = 0.1 * jax.random.normal(jax.random.PRNGKey(2), (32, 16, 3, 3), jnp.float32)
    got = conv2d({"w": wt, "b": jnp.zeros((32,), jnp.float32)}, xt,
                 stride=1, pad=1).astype(jnp.float32)
    ref = lax.conv_general_dilated(
        xt, jnp.transpose(wt, (2, 3, 1, 0)), (1, 1), ((1, 1), (1, 1)),
        dimension_numbers=("NHWC", "HWIO", "NHWC"))
    rel_err = float(jnp.max(jnp.abs(got - ref)) / (jnp.max(jnp.abs(ref)) + 1e-6))
    assert rel_err < 0.05, f"conv-as-matmul mismatch: {rel_err}"

    rgb = jax.random.normal(xkey, (1, 3, 64, 64), jnp.float32)

    fwd = jax.jit(seg_seg_forward)
    pred, edge_list = fwd(params, rgb)
    jax.block_until_ready(pred)
    for e in edge_list:
        jax.block_until_ready(e)

    assert pred.shape == (1, NUM_CLASSES, 64, 64), pred.shape
    assert edge_list[-1].shape == (1, 1, 16, 16), edge_list[-1].shape
    print("KERNEL_OK")
</pallas_src>

<mosaic_0001>
module attributes {stable_mosaic.version = 11 : i64} {
  func.func @_mm_kernel_plain(%arg0: i32, %arg1: i32, %arg2: i32, %arg3: memref<64x256xbf16, #tpu.memory_space<vmem>>, %arg4: memref<256x128xbf16, #tpu.memory_space<vmem>>, %arg5: memref<1x128xf32, #tpu.memory_space<vmem>>, %arg6: memref<64x128xbf16, #tpu.memory_space<vmem>>, %arg7: memref<64x128xf32, #tpu.memory_space<vmem>>) attributes {dimension_semantics = [#tpu.dimension_semantics<parallel>, #tpu.dimension_semantics<parallel>, #tpu.dimension_semantics<arbitrary>], iteration_bounds = array<i64: 1, 1, 1>, scalar_prefetch = 0 : i64, scratch_operands = 1 : i64, tpu.core_type = #tpu.core_type<tc>, window_params = [{transform_indices = @transform_0, window_bounds = array<i64: 64, 256>}, {transform_indices = @transform_1, window_bounds = array<i64: 256, 128>}, {transform_indices = @transform_2, window_bounds = array<i64: 1, 128>}, {transform_indices = @transform_3, window_bounds = array<i64: 64, 128>}]} {
    %c0_i32 = arith.constant 0 : i32
    %0 = arith.cmpi eq, %arg2, %c0_i32 : i32
    %1 = arith.extui %0 : i1 to i32
    %c0_i32_0 = arith.constant 0 : i32
    %2 = arith.cmpi ne, %1, %c0_i32_0 : i32
    scf.if %2 {
      %cst_10 = arith.constant 0.000000e+00 : f32
      %12 = vector.broadcast %cst_10 : f32 to vector<64x128xf32>
      %c0_11 = arith.constant 0 : index
      %c0_12 = arith.constant 0 : index
      %13 = vector.load %arg7[%c0_11, %c0_12] : memref<64x128xf32, #tpu.memory_space<vmem>>, vector<64x128xf32>
      tpu.vector_store %arg7[%c0_11, %c0_12], %12 {strides = array<i32>} : memref<64x128xf32, #tpu.memory_space<vmem>>, vector<64x128xf32>,
    } else {
    }
    %c0 = arith.constant 0 : index
    %c0_1 = arith.constant 0 : index
    %3 = vector.load %arg7[%c0, %c0_1] : memref<64x128xf32, #tpu.memory_space<vmem>>, vector<64x128xf32>
    %c0_2 = arith.constant 0 : index
    %c0_3 = arith.constant 0 : index
    %4 = vector.load %arg3[%c0_2, %c0_3] : memref<64x256xbf16, #tpu.memory_space<vmem>>, vector<64x256xbf16>
    %c0_4 = arith.constant 0 : index
    %c0_5 = arith.constant 0 : index
    %5 = vector.load %arg4[%c0_4, %c0_5] : memref<256x128xbf16, #tpu.memory_space<vmem>>, vector<256x128xbf16>
    %cst = arith.constant dense<0.000000e+00> : vector<64x128xf32>
    %6 = tpu.matmul %4, %5, %cst {dimension_numbers = #tpu.dot_dimension_numbers<[1], [0], [0], [1], [0, 0, 1, 1], [], []>} : vector<64x256xbf16>, vector<256x128xbf16>, vector<64x128xf32> -> vector<64x128xf32>
    %7 = arith.addf %3, %6 : vector<64x128xf32>
    %c0_6 = arith.constant 0 : index
    %c0_7 = arith.constant 0 : index
    %8 = vector.load %arg7[%c0_6, %c0_7] : memref<64x128xf32, #tpu.memory_space<vmem>>, vector<64x128xf32>
    tpu.vector_store %arg7[%c0_6, %c0_7], %7 {strides = array<i32>} : memref<64x128xf32, #tpu.memory_space<vmem>>, vector<64x128xf32>,
    %c0_i32_8 = arith.constant 0 : i32
    %9 = arith.cmpi eq, %arg2, %c0_i32_8 : i32
    %10 = arith.extui %9 : i1 to i32
    %c0_i32_9 = arith.constant 0 : i32
    %11 = arith.cmpi ne, %10, %c0_i32_9 : i32
    scf.if %11 {
      %c0_10 = arith.constant 0 : index
      %c0_11 = arith.constant 0 : index
      %12 = vector.load %arg7[%c0_10, %c0_11] : memref<64x128xf32, #tpu.memory_space<vmem>>, vector<64x128xf32>
      %c0_12 = arith.constant 0 : index
      %c0_13 = arith.constant 0 : index
      %13 = vector.load %arg5[%c0_12, %c0_13] : memref<1x128xf32, #tpu.memory_space<vmem>>, vector<1x128xf32>
      %14 = vector.broadcast %13 : vector<1x128xf32> to vector<64x128xf32>
      %15 = arith.addf %12, %14 : vector<64x128xf32>
      %16 = arith.truncf %15 : vector<64x128xf32> to vector<64x128xbf16>
      %c0_14 = arith.constant 0 : index
      %c0_15 = arith.constant 0 : index
      %17 = vector.load %arg6[%c0_14, %c0_15] : memref<64x128xbf16, #tpu.memory_space<vmem>>, vector<64x128xbf16>
      tpu.vector_store %arg6[%c0_14, %c0_15], %16 {strides = array<i32>} : memref<64x128xbf16, #tpu.memory_space<vmem>>, vector<64x128xbf16>,
    } else {
    }
    return
  }
  func.func @transform_0(%arg0: i32, %arg1: i32, %arg2: i32) -> (i32, i32) {
    %c0_i32 = arith.constant 0 : i32
    return %arg0, %arg2 : i32, i32
  }
  func.func @transform_1(%arg0: i32, %arg1: i32, %arg2: i32) -> (i32, i32) {
    %c0_i32 = arith.constant 0 : i32
    return %arg2, %arg1 : i32, i32
  }
  func.func @transform_2(%arg0: i32, %arg1: i32, %arg2: i32) -> (i32, i32) {
    %c0_i32 = arith.constant 0 : i32
    %c0_i32_0 = arith.constant 0 : i32
    return %c0_i32, %arg1 : i32, i32
  }
  func.func @transform_3(%arg0: i32, %arg1: i32, %arg2: i32) -> (i32, i32) {
    %c0_i32 = arith.constant 0 : i32
    return %arg0, %arg1 : i32, i32
  }
}

</mosaic_0001>

<llo_original>
// kernel: tpu_custom_call.1
$region0: #{tpu_custom_call.1}
  #allocation0 [shape = 'u32[]', space=smem, size = 0x4, offset = 0x4, fixed_abs, tag = 'smem constant byte address 0x4 - core index']
  #allocation1 [shape = 'u32[144,128]{1,0:T(1,128)}', space=vmem, size = 0x12000, scoped, tag = 'internal scratch']
  #allocation2 [shape = 'f32[64,128]{1,0:T(8,128)}', space=vmem, size = 0x8000, scoped, tag = 'scratch operand']
  %s0 = inlined_call_operand.hbm [shape: bf16[64,256], index: 0, kind: input, shape index: {}]
  %s1 = inlined_call_operand.hbm [shape: bf16[256,128], index: 1, kind: input, shape index: {}]
  %s2 = inlined_call_operand.vmem [shape: f32[1,128], index: 2, kind: input, shape index: {}]
  %s3 = inlined_call_operand.hbm [shape: bf16[64,128], index: 3, kind: output, shape index: {}]
  %s4 = sld [smem:[#allocation0]]
  $region38: #{tpu_custom_call.1} parent=0
    _
  %s6 = ssub.s32 1, %s4
  %s7 = scalar_select 0, %s6, %s4
  $region1: #{tpu_custom_call.1} parent=0
    #allocation3 [shape = 'u8[32768]{0}', space=vmem, size = 0x8000, scoped, tag = 'input window, operand 0, single buffered']
    #allocation4 [shape = 's32[1]{0}', space=sflag, size = 0x4, scoped, tag = 'scoped memory for tpu_custom_call.1']
    #allocation5 [shape = 's32[1]{0}', space=sflag, size = 0x4, scoped, tag = 'scoped memory for tpu_custom_call.1']
    #allocation6 [shape = 'u8[65536]{0}', space=vmem, size = 0x10000, scoped, tag = 'input window, operand 1, single buffered']
    #allocation7 [shape = 's32[1]{0}', space=sflag, size = 0x4, scoped, tag = 'scoped memory for tpu_custom_call.1']
    #allocation8 [shape = 'u8[16384]{0}', space=vmem, size = 0x4000, scoped, tag = 'output window, operand 0, single buffered']
    %8 = vsyncpa [#allocation4], 0
    %9 = vsyncpa [#allocation7], 0
    %10 = vsyncpa [#allocation5], 0
    // Predicated region
    $region2: #{tpu_custom_call.1} parent=1 // pred_check
      _
    $region3: #{tpu_custom_call.1} parent=1 // pred_check_branch
      %12 = sbr.rel (0) target = $region5
    $region4: #{tpu_custom_call.1} parent=1 // pred_region
      %s14 = ssub.s32 1024, 1024
      %15 = vsyncadd [#allocation4], %s14
      %s16 = sshll.u32 [#allocation3], 4
      %s17 = int_to_ptr.vmem [resolvable:$true] %s16
      %22 = dma.hbm_to_vmem [thread:$0]  %s0, 1024, %s17, [#allocation4], 128, 128, 8
    $region5: #{tpu_custom_call.1} parent=1 // pred_fallthru
      _
    // Predicated region
    $region6: #{tpu_custom_call.1} parent=1 // pred_check
      _
    $region7: #{tpu_custom_call.1} parent=1 // pred_check_branch
      %24 = sbr.rel (0) target = $region9
    $region8: #{tpu_custom_call.1} parent=1 // pred_region
      %s26 = ssub.s32 2048, 2048
      %27 = vsyncadd [#allocation7], %s26
      %s28 = sshll.u32 [#allocation6], 4
      %s29 = int_to_ptr.vmem [resolvable:$true] %s28
      %34 = dma.hbm_to_vmem [thread:$0]  %s1, 2048, %s29, [#allocation7], 64, 64, 4
    $region9: #{tpu_custom_call.1} parent=1 // pred_fallthru
      _
    // Predicated region
    $region10: #{tpu_custom_call.1} parent=1 // pred_check
      _
    $region11: #{tpu_custom_call.1} parent=1 // pred_check_branch
      %36 = sbr.rel (0) target = $region13
    $region12: #{tpu_custom_call.1} parent=1 // pred_region
      _
    $region13: #{tpu_custom_call.1} parent=1 // pred_fallthru
      _
    // Predicated region
    $region14: #{tpu_custom_call.1} parent=1 // pred_check
      _
    $region15: #{tpu_custom_call.1} parent=1 // pred_check_branch
      %38 = sbr.rel (0) target = $region17
    $region16: #{tpu_custom_call.1} parent=1 // pred_region
      %39 = dma.done [#allocation4], 1024
    $region17: #{tpu_custom_call.1} parent=1 // pred_fallthru
      _
    // Predicated region
    $region18: #{tpu_custom_call.1} parent=1 // pred_check
      _
    $region19: #{tpu_custom_call.1} parent=1 // pred_check_branch
      %41 = sbr.rel (0) target = $region21
    $region20: #{tpu_custom_call.1} parent=1 // pred_region
      %42 = dma.done [#allocation7], 2048
    $region21: #{tpu_custom_call.1} parent=1 // pred_fallthru
      _
    %p44 = scmp.eq.s32.totalorder 0, 0
    // Predicated region
    $region22: #{tpu_custom_call.1} parent=1 // pred_check
      %p45 = pneg %p44
    $region23: #{tpu_custom_call.1} parent=1 // pred_check_branch
      %47 = sbr.rel (%p45) target = $region25
    $region24: #{tpu_custom_call.1} parent=1 // pred_region
      %48 = vst [vmem:[#allocation2] sm:$0xff] 0.0
      %49 = vst [vmem:[#allocation2 + $0x8] sm:$0xff] 0.0
      %50 = vst [vmem:[#allocation2 + $0x10] sm:$0xff] 0.0
      %51 = vst [vmem:[#allocation2 + $0x18] sm:$0xff] 0.0
      %52 = vst [vmem:[#allocation2 + $0x20] sm:$0xff] 0.0
      %53 = vst [vmem:[#allocation2 + $0x28] sm:$0xff] 0.0
      %54 = vst [vmem:[#allocation2 + $0x30] sm:$0xff] 0.0
      %55 = vst [vmem:[#allocation2 + $0x38] sm:$0xff] 0.0
    $region25: #{tpu_custom_call.1} parent=1 // pred_fallthru
      _
    %v56 = vld [vmem:[#allocation2] sm:$0xff]
    %v57 = vld [vmem:[#allocation2 + $0x8] sm:$0xff]
    %v58 = vld [vmem:[#allocation2 + $0x10] sm:$0xff]
    %v59 = vld [vmem:[#allocation2 + $0x18] sm:$0xff]
    %v60 = vld [vmem:[#allocation2 + $0x20] sm:$0xff]
    %v61 = vld [vmem:[#allocation2 + $0x28] sm:$0xff]
    %v62 = vld [vmem:[#allocation2 + $0x30] sm:$0xff]
    %v63 = vld [vmem:[#allocation2 + $0x38] sm:$0xff]
    %v64 = vld [vmem:[#allocation3] sm:$0xff]
    %v65 = vld [vmem:[#allocation3 + $0x8] sm:$0xff]
    %v66 = vld [vmem:[#allocation3 + $0x10] sm:$0xff]
    %v67 = vld [vmem:[#allocation3 + $0x18] sm:$0xff]
    %v68 = vld [vmem:[#allocation3 + $0x20] sm:$0xff]
    %v69 = vld [vmem:[#allocation3 + $0x28] sm:$0xff]
    %v70 = vld [vmem:[#allocation3 + $0x30] sm:$0xff]
    %v71 = vld [vmem:[#allocation3 + $0x38] sm:$0xff]
    %v72 = vld [vmem:[#allocation6] sm:$0xf]
    %v73 = vld [vmem:[#allocation6 + $0x4] sm:$0xf]
    %v74 = vld [vmem:[#allocation6 + $0x8] sm:$0xf]
    %v75 = vld [vmem:[#allocation6 + $0xc] sm:$0xf]
    %v76 = vld [vmem:[#allocation6 + $0x10] sm:$0xf]
    %v77 = vld [vmem:[#allocation6 + $0x14] sm:$0xf]
    %v78 = vld [vmem:[#allocation6 + $0x18] sm:$0xf]
    %v79 = vld [vmem:[#allocation6 + $0x1c] sm:$0xf]
    %v80 = vld [vmem:[#allocation6 + $0x20] sm:$0xf]
    %v81 = vld [vmem:[#allocation6 + $0x24] sm:$0xf]
    %v82 = vld [vmem:[#allocation6 + $0x28] sm:$0xf]
    %v83 = vld [vmem:[#allocation6 + $0x2c] sm:$0xf]
    %v84 = vld [vmem:[#allocation6 + $0x30] sm:$0xf]
    %v85 = vld [vmem:[#allocation6 + $0x34] sm:$0xf]
    %v86 = vld [vmem:[#allocation6 + $0x38] sm:$0xf]
    %v87 = vld [vmem:[#allocation6 + $0x3c] sm:$0xf]
    %v88 = vld [vmem:[#allocation6 + $0x40] sm:$0xf]
    %v89 = vld [vmem:[#allocation6 + $0x44] sm:$0xf]
    %v90 = vld [vmem:[#allocation6 + $0x48] sm:$0xf]
    %v91 = vld [vmem:[#allocation6 + $0x4c] sm:$0xf]
    %v92 = vld [vmem:[#allocation6 + $0x50] sm:$0xf]
    %v93 = vld [vmem:[#allocation6 + $0x54] sm:$0xf]
    %v94 = vld [vmem:[#allocation6 + $0x58] sm:$0xf]
    %v95 = vld [vmem:[#allocation6 + $0x5c] sm:$0xf]
    %v96 = vld [vmem:[#allocation6 + $0x60] sm:$0xf]
    %v97 = vld [vmem:[#allocation6 + $0x64] sm:$0xf]
    %v98 = vld [vmem:[#allocation6 + $0x68] sm:$0xf]
    %v99 = vld [vmem:[#allocation6 + $0x6c] sm:$0xf]
    %v100 = vld [vmem:[#allocation6 + $0x70] sm:$0xf]
    %v101 = vld [vmem:[#allocation6 + $0x74] sm:$0xf]
    %v102 = vld [vmem:[#allocation6 + $0x78] sm:$0xf]
    %v103 = vld [vmem:[#allocation6 + $0x7c] sm:$0xf]
    %v112 = vunpack.c.l.b16 %v64
    %v113 = vunpack.c.h.b16 %v64
    %v114 = vunpack.c.l.b16 %v65
    %v115 = vunpack.c.h.b16 %v65
    %v116 = vunpack.c.l.b16 %v66
    %v117 = vunpack.c.h.b16 %v66
    %v118 = vunpack.c.l.b16 %v67
    %v119 = vunpack.c.h.b16 %v67
    %v120 = vunpack.c.l.b16 %v68
    %v121 = vunpack.c.h.b16 %v68
    %v122 = vunpack.c.l.b16 %v69
    %v123 = vunpack.c.h.b16 %v69
    %v124 = vunpack.c.l.b16 %v70
    %v125 = vunpack.c.h.b16 %v70
    %v126 = vunpack.c.l.b16 %v71
    %v127 = vunpack.c.h.b16 %v71
    %v128 = vpack.c.b16 %v114, %v112
    %v129 = vpack.c.b16 %v115, %v113
    %v130 = vpack.c.b16 %v118, %v116
    %v131 = vpack.c.b16 %v119, %v117
    %v132 = vpack.c.b16 %v122, %v120
    %v133 = vpack.c.b16 %v123, %v121
    %v134 = vpack.c.b16 %v126, %v124
    %v135 = vpack.c.b16 %v127, %v125
    %v176 = vunpack.c.l.b16 %v72
    %v177 = vunpack.c.l.b16 %v73
    %v178 = vunpack.c.l.b16 %v74
    %v179 = vunpack.c.l.b16 %v75
    %v180 = vunpack.c.l.b16 %v76
    %v181 = vunpack.c.l.b16 %v77
    %v182 = vunpack.c.l.b16 %v78
    %v183 = vunpack.c.l.b16 %v79
    %v184 = vunpack.c.l.b16 %v80
    %v185 = vunpack.c.l.b16 %v81
    %v186 = vunpack.c.l.b16 %v82
    %v187 = vunpack.c.l.b16 %v83
    %v188 = vunpack.c.l.b16 %v84
    %v189 = vunpack.c.l.b16 %v85
    %v190 = vunpack.c.l.b16 %v86
    %v191 = vunpack.c.l.b16 %v87
    %v192 = vunpack.c.l.b16 %v88
    %v193 = vunpack.c.l.b16 %v89
    %v194 = vunpack.c.l.b16 %v90
    %v195 = vunpack.c.l.b16 %v91
    %v196 = vunpack.c.l.b16 %v92
    %v197 = vunpack.c.l.b16 %v93
    %v198 = vunpack.c.l.b16 %v94
    %v199 = vunpack.c.l.b16 %v95
    %v200 = vunpack.c.l.b16 %v96
    %v201 = vunpack.c.l.b16 %v97
    %v202 = vunpack.c.l.b16 %v98
    %v203 = vunpack.c.l.b16 %v99
    %v204 = vunpack.c.l.b16 %v100
    %v205 = vunpack.c.l.b16 %v101
    %v206 = vunpack.c.l.b16 %v102
    %v207 = vunpack.c.l.b16 %v103
    %v208 = vpack.c.b16 %v177, %v176
    %v209 = vpack.c.b16 %v179, %v178
    %v210 = vpack.c.b16 %v181, %v180
    %v211 = vpack.c.b16 %v183, %v182
    %v212 = vpack.c.b16 %v185, %v184
    %v213 = vpack.c.b16 %v187, %v186
    %v214 = vpack.c.b16 %v189, %v188
    %v215 = vpack.c.b16 %v191, %v190
    %v216 = vpack.c.b16 %v193, %v192
    %v217 = vpack.c.b16 %v195, %v194
    %v218 = vpack.c.b16 %v197, %v196
    %v219 = vpack.c.b16 %v199, %v198
    %v220 = vpack.c.b16 %v201, %v200
    %v221 = vpack.c.b16 %v203, %v202
    %v222 = vpack.c.b16 %v205, %v204
    %v223 = vpack.c.b16 %v207, %v206
    %240 = vmatprep.subr.bf16.mxu0 0
    %241 = vmatpush1.bf16.msra.mxu0 %v215
    %242 = vmatprep.subr.bf16.mxu0 0
    %243 = vmatpush1.bf16.msra.mxu0 %v214
    %244 = vmatprep.subr.bf16.mxu0 0
    %245 = vmatpush1.bf16.msra.mxu0 %v213
    %246 = vmatprep.subr.bf16.mxu0 0
    %247 = vmatpush1.bf16.msra.mxu0 %v212
    %248 = vmatprep.subr.bf16.mxu0 0
    %249 = vmatpush1.bf16.msra.mxu0 %v211
    %250 = vmatprep.subr.bf16.mxu0 0
    %251 = vmatpush1.bf16.msra.mxu0 %v210
    %252 = vmatprep.subr.bf16.mxu0 0
    %253 = vmatpush1.bf16.msra.mxu0 %v209
    %254 = vmatprep.subr.bf16.mxu0 0
    %255 = vmatpush1.bf16.msra.mxu0 %v208
    %256 = vmatprep.subr.bf16.mxu0 0
    %257 = vmatpush2.bf16.msra.mxu0 %v223
    %258 = vmatprep.subr.bf16.mxu0 0
    %259 = vmatpush2.bf16.msra.mxu0 %v222
    %260 = vmatprep.subr.bf16.mxu0 0
    %261 = vmatpush2.bf16.msra.mxu0 %v221
    %262 = vmatprep.subr.bf16.mxu0 0
    %263 = vmatpush2.bf16.msra.mxu0 %v220
    %264 = vmatprep.subr.bf16.mxu0 0
    %265 = vmatpush2.bf16.msra.mxu0 %v219
    %266 = vmatprep.subr.bf16.mxu0 0
    %267 = vmatpush2.bf16.msra.mxu0 %v218
    %268 = vmatprep.subr.bf16.mxu0 0
    %269 = vmatpush2.bf16.msra.mxu0 %v217
    %270 = vmatprep.subr.bf16.mxu0 0
    %271 = vmatpush2.bf16.msra.mxu0 %v216
    %272 = vmatprep.mubr.bf16.mxu0 %v129
    %273 = vmatmul.mubr.bf16.gmra.mxu0 %v128
    %v274 = vpop.f32.mrf.mxu0
    %v275 = vadd.f32 0.0, %v274
    %v276 = vpop.f32.mrf.mxu0
    %v277 = vpop.f32.mrf.mxu0
    %v278 = vadd.f32 0.0, %v277
    %v279 = vpop.f32.mrf.mxu0
    %280 = vmatprep.mubr.bf16.mxu0 %v131
    %281 = vmatmul.mubr.bf16.gmra.mxu0 %v130
    %v282 = vpop.f32.mrf.mxu0
    %v283 = vadd.f32 0.0, %v282
    %v284 = vpop.f32.mrf.mxu0
    %v285 = vpop.f32.mrf.mxu0
    %v286 = vadd.f32 0.0, %v285
    %v287 = vpop.f32.mrf.mxu0
    %288 = vmatprep.mubr.bf16.mxu0 %v133
    %289 = vmatmul.mubr.bf16.gmra.mxu0 %v132
    %v290 = vpop.f32.mrf.mxu0
    %v291 = vadd.f32 0.0, %v290
    %v292 = vpop.f32.mrf.mxu0
    %v293 = vpop.f32.mrf.mxu0
    %v294 = vadd.f32 0.0, %v293
    %v295 = vpop.f32.mrf.mxu0
    %296 = vmatprep.mubr.bf16.mxu0 %v135
    %297 = vmatmul.mubr.bf16.gmra.mxu0 %v134
    %v298 = vpop.f32.mrf.mxu0
    %v299 = vadd.f32 0.0, %v298
    %v300 = vpop.f32.mrf.mxu0
    %v301 = vpop.f32.mrf.mxu0
    %v302 = vadd.f32 0.0, %v301
    %v303 = vpop.f32.mrf.mxu0
    %304 = vdwg.mxu0
    %v305 = vadd.f32 %v56, %v275
    %v306 = vadd.f32 %v57, %v278
    %v307 = vadd.f32 %v58, %v283
    %v308 = vadd.f32 %v59, %v286
    %v309 = vadd.f32 %v60, %v291
    %v310 = vadd.f32 %v61, %v294
    %v311 = vadd.f32 %v62, %v299
    %v312 = vadd.f32 %v63, %v302
    %313 = vst [vmem:[#allocation2] sm:$0xff] %v305
    %314 = vst [vmem:[#allocation2 + $0x8] sm:$0xff] %v306
    %315 = vst [vmem:[#allocation2 + $0x10] sm:$0xff] %v307
    %316 = vst [vmem:[#allocation2 + $0x18] sm:$0xff] %v308
    %317 = vst [vmem:[#allocation2 + $0x20] sm:$0xff] %v309
    %318 = vst [vmem:[#allocation2 + $0x28] sm:$0xff] %v310
    %319 = vst [vmem:[#allocation2 + $0x30] sm:$0xff] %v311
    %320 = vst [vmem:[#allocation2 + $0x38] sm:$0xff] %v312
    // Predicated region
    $region26: #{tpu_custom_call.1} parent=1 // pred_check
      %p321 = pneg %p44
    $region27: #{tpu_custom_call.1} parent=1 // pred_check_branch
      %323 = sbr.rel (%p321) target = $region29
    $region28: #{tpu_custom_call.1} parent=1 // pred_region
      %v324 = vld [vmem:[#allocation2] sm:$0xff]
      %v325 = vld [vmem:[#allocation2 + $0x8] sm:$0xff]
      %v326 = vld [vmem:[#allocation2 + $0x10] sm:$0xff]
      %v327 = vld [vmem:[#allocation2 + $0x18] sm:$0xff]
      %v328 = vld [vmem:[#allocation2 + $0x20] sm:$0xff]
      %v329 = vld [vmem:[#allocation2 + $0x28] sm:$0xff]
      %v330 = vld [vmem:[#allocation2 + $0x30] sm:$0xff]
      %v331 = vld [vmem:[#allocation2 + $0x38] sm:$0xff]
      %v332 = vld [vmem:[%s2] sm:$0x1]
      %v334 = vlaneseq
      %v335 = vshrl.u32 %v334, 7
      %v336 = vsub.s32 0, %v335
      %v337 = vrot.slane %v332, %v336
      %v339 = vadd.f32 %v324, %v337
      %v340 = vadd.f32 %v325, %v337
      %v341 = vadd.f32 %v326, %v337
      %v342 = vadd.f32 %v327, %v337
      %v343 = vadd.f32 %v328, %v337
      %v344 = vadd.f32 %v329, %v337
      %v345 = vadd.f32 %v330, %v337
      %v346 = vadd.f32 %v331, %v337
      %v347 = vpack.c.bf16 %v340, %v339
      %v348 = vpack.c.bf16 %v342, %v341
      %v349 = vpack.c.bf16 %v344, %v343
      %v350 = vpack.c.bf16 %v346, %v345
      %v355 = vunpack.c.l.b16 %v347
      %v356 = vunpack.c.h.b16 %v347
      %v357 = vunpack.c.l.b16 %v348
      %v358 = vunpack.c.h.b16 %v348
      %v359 = vunpack.c.l.b16 %v349
      %v360 = vunpack.c.h.b16 %v349
      %v361 = vunpack.c.l.b16 %v350
      %v362 = vunpack.c.h.b16 %v350
      %v363 = vpack.c.b16 %v355, %v355
      %v364 = vpack.c.b16 %v356, %v356
      %v365 = vpack.c.b16 %v357, %v357
      %v366 = vpack.c.b16 %v358, %v358
      %v367 = vpack.c.b16 %v359, %v359
      %v368 = vpack.c.b16 %v360, %v360
      %v369 = vpack.c.b16 %v361, %v361
      %v370 = vpack.c.b16 %v362, %v362
      %379 = vst [vmem:[#allocation8] sm:$0xf] %v363
      %380 = vst [vmem:[#allocation8 + $0x4] sm:$0xf] %v364
      %381 = vst [vmem:[#allocation8 + $0x8] sm:$0xf] %v365
      %382 = vst [vmem:[#allocation8 + $0xc] sm:$0xf] %v366
      %383 = vst [vmem:[#allocation8 + $0x10] sm:$0xf] %v367
      %384 = vst [vmem:[#allocation8 + $0x14] sm:$0xf] %v368
      %385 = vst [vmem:[#allocation8 + $0x18] sm:$0xf] %v369
      %386 = vst [vmem:[#allocation8 + $0x1c] sm:$0xf] %v370
    $region29: #{tpu_custom_call.1} parent=1 // pred_fallthru
      _
    // Predicated region
    $region30: #{tpu_custom_call.1} parent=1 // pred_check
      _
    $region31: #{tpu_custom_call.1} parent=1 // pred_check_branch
      %388 = sbr.rel (0) target = $region33
    $region32: #{tpu_custom_call.1} parent=1 // pred_region
      %s390 = ssub.s32 512, 512
      %391 = vsyncadd [#allocation5], %s390
      %s392 = sshll.u32 [#allocation8], 4
      %s393 = int_to_ptr.vmem [resolvable:$true] %s392
      %398 = dma.vmem_to_hbm [thread:$0]  %s393, 512, %s3, [#allocation5], 64, 64, 4
    $region33: #{tpu_custom_call.1} parent=1 // pred_fallthru
      _
    // Predicated region
    $region34: #{tpu_custom_call.1} parent=1 // pred_check
      _
    $region35: #{tpu_custom_call.1} parent=1 // pred_check_branch
      %400 = sbr.rel (0) target = $region37
    $region36: #{tpu_custom_call.1} parent=1 // pred_region
      %401 = dma.done [#allocation5], 512
    $region37: #{tpu_custom_call.1} parent=1 // pred_fallthru
      _
    %402 = vsyncpa [#allocation4], 1
    %403 = vsyncpa [#allocation7], 1
    %404 = vsyncpa [#allocation5], 1

</llo_original>
